<compile_context>
chip_gen: v7x
topology: tpu7x:2x2x1
jax: 0.10.0
libtpu: 0.0.40
codegen_flags: <defaults>
</compile_context>

<pallas_src>
import jax
import jax.numpy as jnp
from jax import lax
from jax.experimental import pallas as pl
from jax.experimental.pallas import tpu as pltpu

IN_F = 10
HID_F = 5
HID_PAD = 8          # hidden dim padded to one sublane tile (zeros in rows 5..7)
OUT_F = 1
LANE = 128
TB_MAX = 16384       # batch-tile width (lanes); multiple of 128

# Contract the last dim of BOTH operands (i.e. lhs @ rhs^T on the MXU).
_NT_DIMS = (((1,), (1,)), ((), ()))


def mlp_kernel(x_ref, w1_ref, b1_ref, w2_ref, b2_ref, o_ref):
    # x_ref : (tb, 10)  natural (batch, feature) layout, batch on sublanes
    # w1_ref: (8, 10)   W1 zero-padded from 5 to 8 output rows
    # b1_ref: (8, 1)    b1 zero-padded
    # w2_ref: (8, 1)    W2 as a column, zero-padded
    # b2_ref: (1, 1)
    # o_ref : (1, tb)   batch on lanes -> lane-dense store
    x = x_ref[...]

    # Layer 1 on the MXU: h[j, n] = sum_k W1[j, k] * x[n, k].
    # Contracting the trailing dim of both operands folds the batch->lane
    # transpose into the matmul (no wrapper transpose, no XLU transpose).
    h = lax.dot_general(w1_ref[...], x, _NT_DIMS,
                        preferred_element_type=jnp.float32)        # (8, tb)
    h = jnp.maximum(h + b1_ref[...], 0.0)                          # bias + ReLU (VPU)

    # Layer 2 as a scaled cross-sublane reduction; padded rows carry zero weight.
    out = jnp.sum(h * w2_ref[...], axis=0, keepdims=True) + b2_ref[...]   # (1, tb)

    o_ref[...] = out.astype(o_ref.dtype)                            # lane-dense store


def simple_network(x, w1, b1, w2, b2, *, tile_batch=TB_MAX):
    """x: (B, 10); w1: (5, 10); b1: (5,); w2: (1, 5); b2: (1,)  -> (B, 1)."""
    B = x.shape[0]

    # Tiny parameter repacking (a few hundred bytes; no per-element pass over x).
    w1p = jnp.zeros((HID_PAD, IN_F), x.dtype).at[:HID_F].set(w1)
    b1p = jnp.zeros((HID_PAD, 1), x.dtype).at[:HID_F, 0].set(b1)
    w2p = jnp.zeros((HID_PAD, 1), x.dtype).at[:HID_F, 0].set(w2.reshape(-1))
    b2p = b2.reshape(OUT_F, 1).astype(x.dtype)

    if B <= tile_batch:
        tb = B                       # single tile, full-dim blocks (always legal)
        n_tiles = 1
    else:
        assert tile_batch % LANE == 0, "tile_batch must be a multiple of 128"
        tb = tile_batch              # multiple of 128; ragged last tile is fine
        n_tiles = pl.cdiv(B, tb)     # padded columns are dropped on write

    out_t = pl.pallas_call(
        mlp_kernel,
        out_shape=jax.ShapeDtypeStruct((OUT_F, B), x.dtype),
        grid=(n_tiles,),
        in_specs=[
            pl.BlockSpec((tb, IN_F), lambda i: (i, 0)),       # x tile: pipelined
            pl.BlockSpec((HID_PAD, IN_F), lambda i: (0, 0)),  # W1: resident
            pl.BlockSpec((HID_PAD, 1), lambda i: (0, 0)),     # b1: resident
            pl.BlockSpec((HID_PAD, 1), lambda i: (0, 0)),     # W2 column: resident
            pl.BlockSpec((OUT_F, 1), lambda i: (0, 0)),       # b2: resident
        ],
        out_specs=pl.BlockSpec((OUT_F, tb), lambda i: (0, i)),
        compiler_params=pltpu.CompilerParams(
            dimension_semantics=("parallel",),
            # ~2 x 8 MiB double-buffered x tiles + ~2 MiB misc at tb=16384;
            # 32 MiB covers v5e's 16 MiB scoped default and fits v7x's 64 MiB.
            vmem_limit_bytes=32 * 1024 * 1024),
    )(x, w1p, b1p, w2p, b2p)

    # (1, B) -> (B, 1): free reshape (one dim is 1), drops nothing.
    return out_t.reshape(B, OUT_F)


def _init_params(key):
    """Deterministic init mimicking nn.Linear defaults (uniform +/- 1/sqrt(fan_in))."""
    k1, k2, k3, k4 = jax.random.split(key, 4)
    bound1 = 1.0 / jnp.sqrt(10.0)
    bound2 = 1.0 / jnp.sqrt(5.0)
    w1 = jax.random.uniform(k1, (HID_F, IN_F), jnp.float32, -bound1, bound1)
    b1 = jax.random.uniform(k2, (HID_F,), jnp.float32, -bound1, bound1)
    w2 = jax.random.uniform(k3, (OUT_F, HID_F), jnp.float32, -bound2, bound2)
    b2 = jax.random.uniform(k4, (OUT_F,), jnp.float32, -bound2, bound2)
    return w1, b1, w2, b2


def _ref(x, w1, b1, w2, b2):
    return jnp.maximum(x @ w1.T + b1, 0.0) @ w2.T + b2


if __name__ == "__main__":
    key = jax.random.PRNGKey(0)
    k_x, k_x2, k_p = jax.random.split(key, 3)
    w1, b1, w2, b2 = _init_params(k_p)

    net = jax.jit(simple_network, static_argnames=("tile_batch",))

    # Small batch (single full-dim tile), consistent with the module's (B, 10) input.
    x = jax.random.normal(k_x, (8, IN_F), jnp.float32)
    out = jax.block_until_ready(net(x, w1, b1, w2, b2))
    assert out.shape == (8, 1)
    assert jnp.allclose(out, _ref(x, w1, b1, w2, b2), atol=1e-5, rtol=1e-5)

    # Multi-tile path with a ragged last tile (small tile override for the test).
    x2 = jax.random.normal(k_x2, (300, IN_F), jnp.float32)
    out2 = jax.block_until_ready(net(x2, w1, b1, w2, b2, tile_batch=128))
    assert out2.shape == (300, 1)
    assert jnp.allclose(out2, _ref(x2, w1, b1, w2, b2), atol=1e-5, rtol=1e-5)

    print("KERNEL_OK")
</pallas_src>

<mosaic_0001>
module attributes {stable_mosaic.version = 11 : i64} {
  func.func @mlp_kernel(%arg0: i32, %arg1: memref<8x10xf32, #tpu.memory_space<vmem>>, %arg2: memref<8x10xf32, #tpu.memory_space<vmem>>, %arg3: memref<8x1xf32, #tpu.memory_space<vmem>>, %arg4: memref<8x1xf32, #tpu.memory_space<vmem>>, %arg5: memref<1x1xf32, #tpu.memory_space<vmem>>, %arg6: memref<1x8xf32, #tpu.memory_space<vmem>>) attributes {dimension_semantics = [#tpu.dimension_semantics<parallel>], iteration_bounds = array<i64: 1>, scalar_prefetch = 0 : i64, scratch_operands = 0 : i64, tpu.core_type = #tpu.core_type<tc>, window_params = [{transform_indices = @transform_0, window_bounds = array<i64: 8, 10>}, {pipeline_mode = #tpu.pipeline_mode<synchronous>, transform_indices = @transform_1, window_bounds = array<i64: 8, 10>}, {pipeline_mode = #tpu.pipeline_mode<synchronous>, transform_indices = @transform_2, window_bounds = array<i64: 8, 1>}, {pipeline_mode = #tpu.pipeline_mode<synchronous>, transform_indices = @transform_3, window_bounds = array<i64: 8, 1>}, {pipeline_mode = #tpu.pipeline_mode<synchronous>, transform_indices = @transform_4, window_bounds = array<i64: 1, 1>}, {transform_indices = @transform_5, window_bounds = array<i64: 1, 8>}]} {
    %c0 = arith.constant 0 : index
    %c0_0 = arith.constant 0 : index
    %0 = vector.load %arg1[%c0, %c0_0] : memref<8x10xf32, #tpu.memory_space<vmem>>, vector<8x10xf32>
    %c0_1 = arith.constant 0 : index
    %c0_2 = arith.constant 0 : index
    %1 = vector.load %arg2[%c0_1, %c0_2] : memref<8x10xf32, #tpu.memory_space<vmem>>, vector<8x10xf32>
    %cst = arith.constant dense<0.000000e+00> : vector<8x8xf32>
    %2 = tpu.matmul %1, %0, %cst {dimension_numbers = #tpu.dot_dimension_numbers<[1], [1], [0], [0], [0, 0, 1, 0], [], []>} : vector<8x10xf32>, vector<8x10xf32>, vector<8x8xf32> -> vector<8x8xf32>
    %c0_3 = arith.constant 0 : index
    %c0_4 = arith.constant 0 : index
    %3 = vector.load %arg3[%c0_3, %c0_4] : memref<8x1xf32, #tpu.memory_space<vmem>>, vector<8x1xf32>
    %4 = vector.broadcast %3 : vector<8x1xf32> to vector<8x8xf32>
    %5 = arith.addf %2, %4 : vector<8x8xf32>
    %cst_5 = arith.constant 0.000000e+00 : f32
    %6 = vector.broadcast %cst_5 : f32 to vector<8x8xf32>
    %7 = arith.maximumf %5, %6 : vector<8x8xf32>
    %c0_6 = arith.constant 0 : index
    %c0_7 = arith.constant 0 : index
    %8 = vector.load %arg4[%c0_6, %c0_7] : memref<8x1xf32, #tpu.memory_space<vmem>>, vector<8x1xf32>
    %9 = vector.broadcast %8 : vector<8x1xf32> to vector<8x8xf32>
    %10 = arith.mulf %7, %9 : vector<8x8xf32>
    %cst_8 = arith.constant dense<0.000000e+00> : vector<8xf32>
    %11 = vector.multi_reduction <add>, %10, %cst_8 [0] : vector<8x8xf32> to vector<8xf32>
    %12 = vector.shape_cast %11 : vector<8xf32> to vector<1x8xf32>
    %c0_9 = arith.constant 0 : index
    %c0_10 = arith.constant 0 : index
    %13 = vector.load %arg5[%c0_9, %c0_10] : memref<1x1xf32, #tpu.memory_space<vmem>>, vector<1x1xf32>
    %14 = vector.broadcast %13 : vector<1x1xf32> to vector<1x8xf32>
    %15 = arith.addf %12, %14 : vector<1x8xf32>
    %c0_11 = arith.constant 0 : index
    %c0_12 = arith.constant 0 : index
    %16 = vector.load %arg6[%c0_11, %c0_12] : memref<1x8xf32, #tpu.memory_space<vmem>>, vector<1x8xf32>
    tpu.vector_store %arg6[%c0_11, %c0_12], %15 {strides = array<i32>} : memref<1x8xf32, #tpu.memory_space<vmem>>, vector<1x8xf32>,
    return
  }
  func.func @transform_0(%arg0: i32) -> (i32, i32) {
    %c0_i32 = arith.constant 0 : i32
    %c0_i32_0 = arith.constant 0 : i32
    return %arg0, %c0_i32 : i32, i32
  }
  func.func @transform_1(%arg0: i32) -> (i32, i32) {
    %c0_i32 = arith.constant 0 : i32
    %c0_i32_0 = arith.constant 0 : i32
    %c0_i32_1 = arith.constant 0 : i32
    return %c0_i32, %c0_i32_0 : i32, i32
  }
  func.func @transform_2(%arg0: i32) -> (i32, i32) {
    %c0_i32 = arith.constant 0 : i32
    %c0_i32_0 = arith.constant 0 : i32
    %c0_i32_1 = arith.constant 0 : i32
    return %c0_i32, %c0_i32_0 : i32, i32
  }
  func.func @transform_3(%arg0: i32) -> (i32, i32) {
    %c0_i32 = arith.constant 0 : i32
    %c0_i32_0 = arith.constant 0 : i32
    %c0_i32_1 = arith.constant 0 : i32
    return %c0_i32, %c0_i32_0 : i32, i32
  }
  func.func @transform_4(%arg0: i32) -> (i32, i32) {
    %c0_i32 = arith.constant 0 : i32
    %c0_i32_0 = arith.constant 0 : i32
    %c0_i32_1 = arith.constant 0 : i32
    return %c0_i32, %c0_i32_0 : i32, i32
  }
  func.func @transform_5(%arg0: i32) -> (i32, i32) {
    %c0_i32 = arith.constant 0 : i32
    %c0_i32_0 = arith.constant 0 : i32
    return %c0_i32, %arg0 : i32, i32
  }
}

</mosaic_0001>

<llo_original>
// kernel: simple_network.1
$region0: #{simple_network.1}
  #allocation0 [shape = 'u32[]', space=smem, size = 0x4, offset = 0x4, fixed_abs, tag = 'smem constant byte address 0x4 - core index']
  #allocation1 [shape = 'u32[144,128]{1,0:T(1,128)}', space=vmem, size = 0x12000, scoped, tag = 'internal scratch']
  #allocation2 [shape = 'f32[1,1]{1,0:T(1,128)S(1)}', space=vmem, size = 0x200, scoped, tag = 'scoped memory for simple_network.1']
  %s0 = inlined_call_operand.vmem [shape: f32[8,10], index: 0, kind: input, shape index: {}]
  %s1 = inlined_call_operand.vmem [shape: f32[8,10], index: 1, kind: input, shape index: {}]
  %s2 = inlined_call_operand.vmem [shape: f32[8,1], index: 2, kind: input, shape index: {}]
  %s3 = inlined_call_operand.vmem [shape: f32[8,1], index: 3, kind: input, shape index: {}]
  %s4 = inlined_call_operand.<no memory space> [shape: f32[1,1], index: 4, kind: input, shape index: {}]
  %s5 = inlined_call_operand.hbm [shape: f32[1,8], index: 5, kind: output, shape index: {}]
  %s6 = sld [smem:[#allocation0]]
  $region30: #{simple_network.1} parent=0
    _
  %s8 = ssub.s32 1, %s6
  %s9 = scalar_select 0, %s8, %s6
  %v10 = vstv %s4
  %11 = vst [vmem:[#allocation2] sm:$0x1] %v10
  $region1: #{simple_network.1} parent=0
    #allocation3 [shape = 'u8[512]{0}', space=vmem, size = 0x400, scoped, tag = 'output window, operand 0, single buffered']
    #allocation4 [shape = 's32[1]{0}', space=sflag, size = 0x4, scoped, tag = 'scoped memory for simple_network.1']
    %12 = vsyncpa [#allocation4], 0
    // Predicated region
    $region2: #{simple_network.1} parent=1 // pred_check
      _
    $region3: #{simple_network.1} parent=1 // pred_check_branch
      %14 = sbr.rel (0) target = $region5
    $region4: #{simple_network.1} parent=1 // pred_region
      _
    $region5: #{simple_network.1} parent=1 // pred_fallthru
      _
    // Predicated region
    $region6: #{simple_network.1} parent=1 // pred_check
      _
    $region7: #{simple_network.1} parent=1 // pred_check_branch
      %16 = sbr.rel (0) target = $region9
    $region8: #{simple_network.1} parent=1 // pred_region
      _
    $region9: #{simple_network.1} parent=1 // pred_fallthru
      _
    // Predicated region
    $region10: #{simple_network.1} parent=1 // pred_check
      _
    $region11: #{simple_network.1} parent=1 // pred_check_branch
      %18 = sbr.rel (0) target = $region13
    $region12: #{simple_network.1} parent=1 // pred_region
      _
    $region13: #{simple_network.1} parent=1 // pred_fallthru
      _
    // Predicated region
    $region14: #{simple_network.1} parent=1 // pred_check
      _
    $region15: #{simple_network.1} parent=1 // pred_check_branch
      %20 = sbr.rel (0) target = $region17
    $region16: #{simple_network.1} parent=1 // pred_region
      _
    $region17: #{simple_network.1} parent=1 // pred_fallthru
      _
    // Predicated region
    $region18: #{simple_network.1} parent=1 // pred_check
      _
    $region19: #{simple_network.1} parent=1 // pred_check_branch
      %22 = sbr.rel (0) target = $region21
    $region20: #{simple_network.1} parent=1 // pred_region
      _
    $region21: #{simple_network.1} parent=1 // pred_fallthru
      _
    %v23 = vld [vmem:[%s0] sm:$0xff]
    %v24 = vld [vmem:[%s1] sm:$0xff]
    %v25 = vld [vmem:[%s2] sm:$0xff]
    %27 = vset.pattern.permute.xlu0 0
    %28 = vperm.xlu0 %27, %v25
    %v29 = vpop.permute.xlu0 %28
    %vm31 = vcmask 80896
    %v33 = vsel %vm31, %v24, 0
    %v36 = vsel %vm31, %v23, 0
    %38 = vmatprep.subr.mxu0 0.0
    %39 = vmatpush1.xpose.msra.mxu0 %v36
    %40 = vmatprep.subr.mxu0 0.0
    %41 = vmatpush1.xpose.msra.mxu0 0.0
    %42 = vmatprep.subr.mxu0 0.0
    %43 = vmatpush1.xpose.msra.mxu0 0.0
    %44 = vmatprep.subr.mxu0 0.0
    %45 = vmatpush1.xpose.msra.mxu0 0.0
    %46 = vmatprep.subr.mxu0 0.0
    %47 = vmatpush1.xpose.msra.mxu0 0.0
    %48 = vmatprep.subr.mxu0 0.0
    %49 = vmatpush1.xpose.msra.mxu0 0.0
    %50 = vmatprep.subr.mxu0 0.0
    %51 = vmatpush1.xpose.msra.mxu0 0.0
    %52 = vmatprep.subr.mxu0 0.0
    %53 = vmatpush1.xpose.msra.mxu0 0.0
    %54 = vmatprep.subr.mxu0 0.0
    %55 = vmatpush1.xpose.msra.mxu0 0.0
    %56 = vmatprep.subr.mxu0 0.0
    %57 = vmatpush1.xpose.msra.mxu0 0.0
    %58 = vmatprep.subr.mxu0 0.0
    %59 = vmatpush1.xpose.msra.mxu0 0.0
    %60 = vmatprep.subr.mxu0 0.0
    %61 = vmatpush1.xpose.msra.mxu0 0.0
    %62 = vmatprep.subr.mxu0 0.0
    %63 = vmatpush1.xpose.msra.mxu0 0.0
    %64 = vmatprep.subr.mxu0 0.0
    %65 = vmatpush1.xpose.msra.mxu0 0.0
    %66 = vmatprep.subr.mxu0 0.0
    %67 = vmatpush1.xpose.msra.mxu0 0.0
    %68 = vmatprep.subr.mxu0 0.0
    %69 = vmatpush1.xpose.msra.mxu0 0.0
    %70 = vmatprep.subr.mxu0 0.0
    %71 = vmatpush1.xpose.msra.mxu0 0.0
    %72 = vmatprep.subr.mxu0 0.0
    %73 = vmatpush1.xpose.msra.mxu0 0.0
    %74 = vmatprep.subr.mxu0 0.0
    %75 = vmatpush1.xpose.msra.mxu0 0.0
    %76 = vmatprep.subr.mxu0 0.0
    %77 = vmatpush1.xpose.msra.mxu0 0.0
    %78 = vmatprep.subr.mxu0 0.0
    %79 = vmatpush1.xpose.msra.mxu0 0.0
    %80 = vmatprep.subr.mxu0 0.0
    %81 = vmatpush1.xpose.msra.mxu0 0.0
    %82 = vmatprep.subr.mxu0 0.0
    %83 = vmatpush1.xpose.msra.mxu0 0.0
    %84 = vmatprep.subr.mxu0 0.0
    %85 = vmatpush1.xpose.msra.mxu0 0.0
    %86 = vmatprep.subr.mxu0 0.0
    %87 = vmatpush1.xpose.msra.mxu0 0.0
    %88 = vmatprep.subr.mxu0 0.0
    %89 = vmatpush1.xpose.msra.mxu0 0.0
    %90 = vmatprep.subr.mxu0 0.0
    %91 = vmatpush1.xpose.msra.mxu0 0.0
    %92 = vmatprep.subr.mxu0 0.0
    %93 = vmatpush1.xpose.msra.mxu0 0.0
    %94 = vmatprep.subr.mxu0 0.0
    %95 = vmatpush1.xpose.msra.mxu0 0.0
    %96 = vmatprep.subr.mxu0 0.0
    %97 = vmatpush1.xpose.msra.mxu0 0.0
    %98 = vmatprep.subr.mxu0 0.0
    %99 = vmatpush1.xpose.msra.mxu0 0.0
    %100 = vmatprep.subr.mxu0 0.0
    %101 = vmatpush1.xpose.msra.mxu0 0.0
    %102 = vmatprep.mubr.f32.mxu0 0.0
    %103 = vmatmul.mubr.f32.gmra.mrb[0].mxu0 %v33
    %v104 = vpop.f32.mrb[0].mxu0
    %v105 = vadd.f32 %v29, %v104
    %v106 = vpop.f32.mrb[0].mxu0
    %107 = vdwg.mxu0
    %v108 = vmax.f32 %v105, 0.0
    %v109 = vld [vmem:[%s3] sm:$0xff]
    %111 = vset.pattern.permute.xlu0 0
    %112 = vperm.xlu0 %111, %v109
    %v113 = vpop.permute.xlu0 %112
    %v115 = vmul.f32 %v108, %v113
    %vm116 = vcmask 64512
    %v117 = vsel %vm116, %v115, 0.0
    %v118 = vrot.slane %v117, 4
    %v119 = vadd.f32 %v117, %v118
    %v120 = vrot.slane %v119, 2
    %v121 = vadd.f32 %v119, %v120
    %v122 = vrot.slane %v121, 1
    %v123 = vadd.f32 %v121, %v122
    %v124 = vld [vmem:[#allocation2] sm:$0x1]
    %126 = vset.pattern.permute.xlu0 0
    %127 = vperm.xlu0 %126, %v124
    %v128 = vpop.permute.xlu0 %127
    %v130 = vlaneseq
    %v131 = vshrl.u32 %v130, 7
    %v132 = vsub.s32 0, %v131
    %v133 = vrot.slane %v128, %v132
    %v134 = vadd.f32 %v123, %v133
    %vm135 = vcmask 57344
    %136 = vst.msk [vmem:[#allocation3] sm:$0x1] %vm135, %v134
    // Predicated region
    $region22: #{simple_network.1} parent=1 // pred_check
      _
    $region23: #{simple_network.1} parent=1 // pred_check_branch
      %138 = sbr.rel (0) target = $region25
    $region24: #{simple_network.1} parent=1 // pred_region
      %s140 = ssub.s32 16, 16
      %141 = vsyncadd [#allocation4], %s140
      %s143 = sshll.u32 [#allocation3], 4
      %s144 = int_to_ptr.vmem [resolvable:$true] %s143
      %146 = dma.vmem_to_hbm [thread:$0]  %s144, 16, %s5, [#allocation4]
    $region25: #{simple_network.1} parent=1 // pred_fallthru
      _
    // Predicated region
    $region26: #{simple_network.1} parent=1 // pred_check
      _
    $region27: #{simple_network.1} parent=1 // pred_check_branch
      %148 = sbr.rel (0) target = $region29
    $region28: #{simple_network.1} parent=1 // pred_region
      %149 = dma.done [#allocation4], 16
    $region29: #{simple_network.1} parent=1 // pred_fallthru
      _
    %150 = vsyncpa [#allocation4], 1

</llo_original>
